<compile_context>
chip_gen: v6e
topology: v6e:2x2x1
jax: 0.10.0
libtpu: 0.0.40
codegen_flags: <defaults>
</compile_context>

<pallas_src>
import functools

import jax
import jax.numpy as jnp
from jax.experimental import pallas as pl
from jax.experimental.pallas import tpu as pltpu


def _round_up(x: int, m: int) -> int:
    return ((x + m - 1) // m) * m


def mlp_base_kernel(x_ref, w_ref, b_ref, o_ref):
    # x_ref: (TILE_B, D)   w_ref: (D, H)   b_ref: (1, H)   o_ref: (TILE_B, H)
    # Linear (MXU matmul, f32 accumulation) with fused bias + ReLU.
    y = jnp.dot(x_ref[...], w_ref[...], preferred_element_type=jnp.float32)
    y = y + b_ref[...]
    o_ref[...] = jnp.maximum(y, 0.0).astype(o_ref.dtype)


def prepare_mlp_base_params(w, b):
    """One-time re-layout of PyTorch Linear params for the kernel.

    w: (hidden, num_inputs) -> (num_inputs, hidden)   (natural (K, N) MXU RHS)
    b: (hidden,)            -> (1, hidden)
    Do this once at parameter-init time, not per forward call.
    """
    w_t = jnp.asarray(w, jnp.float32).T
    b2d = jnp.asarray(b, jnp.float32).reshape(1, -1)
    return w_t, b2d


@functools.partial(jax.jit, static_argnames=("tile_b",))
def mlp_base_forward(x, w_t, b2d, *, tile_b: int = 2048):
    """Pallas forward: relu(x @ W.T + b), with pre-transposed weights.

    x:   (batch, num_inputs) f32
    w_t: (num_inputs, hidden) f32   (from prepare_mlp_base_params)
    b2d: (1, hidden) f32
    """
    batch, d = x.shape
    hidden = w_t.shape[1]

    # Batch tile: big enough to amortize per-step overhead, small enough to
    # give >=2 grid steps on large batches (v7x megacore) and stay well under
    # the v5e scoped-VMEM default.  Always a multiple of the 8-row sublane
    # granule.
    tb = min(tile_b, max(8, _round_up(pl.cdiv(batch, 2), 8)))
    grid = (pl.cdiv(batch, tb),)  # partial tail block handled by Pallas masking

    out = pl.pallas_call(
        mlp_base_kernel,
        out_shape=jax.ShapeDtypeStruct((batch, hidden), jnp.float32),
        grid=grid,
        in_specs=[
            # x: tiled along batch, streamed / double-buffered.
            pl.BlockSpec((tb, d), lambda i: (i, 0)),
            # W, b: same block every step -> stay resident in VMEM.
            pl.BlockSpec((d, hidden), lambda i: (0, 0)),
            pl.BlockSpec((1, hidden), lambda i: (0, 0)),
        ],
        # Last dim equals the full array dim (hidden) -> no lane padding of
        # the HBM output; masked stores are hidden under the output DMA.
        out_specs=pl.BlockSpec((tb, hidden), lambda i: (i, 0)),
        compiler_params=pltpu.CompilerParams(
            dimension_semantics=("parallel",),
        ),
    )(x, w_t, b2d)
    return out


def mlp_base_reference(x, w, b):
    return jnp.maximum(x @ w.T + b[None, :], 0.0)


if __name__ == "__main__":
    # CartPole: observation dim = 4, hidden_size = 20 (module default).
    num_inputs = 4
    hidden_size = 20

    key = jax.random.PRNGKey(0)
    kx, kw, kx2 = jax.random.split(key, 3)

    # nn.init.normal_(weight, mean=0, std=0.1); nn.init.constant_(bias, 0.1)
    w = 0.1 * jax.random.normal(kw, (hidden_size, num_inputs), dtype=jnp.float32)
    b = jnp.full((hidden_size,), 0.1, dtype=jnp.float32)
    w_t, b2d = prepare_mlp_base_params(w, b)

    # Small batch (single grid step).
    batch = 8
    x = jax.random.normal(kx, (batch, num_inputs), dtype=jnp.float32)
    out = jax.block_until_ready(mlp_base_forward(x, w_t, b2d))
    ref = mlp_base_reference(x, w, b)
    assert out.shape == (batch, hidden_size)
    assert jnp.allclose(out, ref, atol=1e-5, rtol=1e-5)

    # Larger, non-multiple-of-tile batch: exercises the multi-step batch grid,
    # resident-weight BlockSpecs, and the masked partial-tail block.
    batch2 = 1000
    x2 = jax.random.normal(kx2, (batch2, num_inputs), dtype=jnp.float32)
    ref2 = mlp_base_reference(x2, w, b)

    out2 = jax.block_until_ready(mlp_base_forward(x2, w_t, b2d, tile_b=256))
    assert out2.shape == (batch2, hidden_size)
    assert jnp.allclose(out2, ref2, atol=1e-5, rtol=1e-5)

    # Default tile path (>=2 grid steps via the cdiv(batch, 2) cap).
    out3 = jax.block_until_ready(mlp_base_forward(x2, w_t, b2d))
    assert jnp.allclose(out3, ref2, atol=1e-5, rtol=1e-5)

    print("KERNEL_OK")
</pallas_src>

<mosaic_0001>
module attributes {stable_mosaic.version = 11 : i64} {
  func.func @mlp_base_kernel(%arg0: i32, %arg1: memref<8x4xf32, #tpu.memory_space<vmem>>, %arg2: memref<4x20xf32, #tpu.memory_space<vmem>>, %arg3: memref<1x20xf32, #tpu.memory_space<vmem>>, %arg4: memref<8x20xf32, #tpu.memory_space<vmem>>) attributes {dimension_semantics = [#tpu.dimension_semantics<parallel>], iteration_bounds = array<i64: 1>, scalar_prefetch = 0 : i64, scratch_operands = 0 : i64, tpu.core_type = #tpu.core_type<tc>, window_params = [{transform_indices = @transform_0, window_bounds = array<i64: 8, 4>}, {pipeline_mode = #tpu.pipeline_mode<synchronous>, transform_indices = @transform_1, window_bounds = array<i64: 4, 20>}, {pipeline_mode = #tpu.pipeline_mode<synchronous>, transform_indices = @transform_2, window_bounds = array<i64: 1, 20>}, {transform_indices = @transform_3, window_bounds = array<i64: 8, 20>}]} {
    %c0 = arith.constant 0 : index
    %c0_0 = arith.constant 0 : index
    %0 = vector.load %arg1[%c0, %c0_0] : memref<8x4xf32, #tpu.memory_space<vmem>>, vector<8x4xf32>
    %c0_1 = arith.constant 0 : index
    %c0_2 = arith.constant 0 : index
    %1 = vector.load %arg2[%c0_1, %c0_2] : memref<4x20xf32, #tpu.memory_space<vmem>>, vector<4x20xf32>
    %cst = arith.constant dense<0.000000e+00> : vector<8x20xf32>
    %2 = tpu.matmul %0, %1, %cst {dimension_numbers = #tpu.dot_dimension_numbers<[1], [0], [0], [1], [0, 0, 1, 1], [], []>} : vector<8x4xf32>, vector<4x20xf32>, vector<8x20xf32> -> vector<8x20xf32>
    %c0_3 = arith.constant 0 : index
    %c0_4 = arith.constant 0 : index
    %3 = vector.load %arg3[%c0_3, %c0_4] : memref<1x20xf32, #tpu.memory_space<vmem>>, vector<1x20xf32>
    %4 = vector.broadcast %3 : vector<1x20xf32> to vector<8x20xf32>
    %5 = arith.addf %2, %4 : vector<8x20xf32>
    %cst_5 = arith.constant 0.000000e+00 : f32
    %6 = vector.broadcast %cst_5 : f32 to vector<8x20xf32>
    %7 = arith.maximumf %5, %6 : vector<8x20xf32>
    %c0_6 = arith.constant 0 : index
    %c0_7 = arith.constant 0 : index
    %8 = vector.load %arg4[%c0_6, %c0_7] : memref<8x20xf32, #tpu.memory_space<vmem>>, vector<8x20xf32>
    tpu.vector_store %arg4[%c0_6, %c0_7], %7 {strides = array<i32>} : memref<8x20xf32, #tpu.memory_space<vmem>>, vector<8x20xf32>,
    return
  }
  func.func @transform_0(%arg0: i32) -> (i32, i32) {
    %c0_i32 = arith.constant 0 : i32
    %c0_i32_0 = arith.constant 0 : i32
    return %arg0, %c0_i32 : i32, i32
  }
  func.func @transform_1(%arg0: i32) -> (i32, i32) {
    %c0_i32 = arith.constant 0 : i32
    %c0_i32_0 = arith.constant 0 : i32
    %c0_i32_1 = arith.constant 0 : i32
    return %c0_i32, %c0_i32_0 : i32, i32
  }
  func.func @transform_2(%arg0: i32) -> (i32, i32) {
    %c0_i32 = arith.constant 0 : i32
    %c0_i32_0 = arith.constant 0 : i32
    %c0_i32_1 = arith.constant 0 : i32
    return %c0_i32, %c0_i32_0 : i32, i32
  }
  func.func @transform_3(%arg0: i32) -> (i32, i32) {
    %c0_i32 = arith.constant 0 : i32
    %c0_i32_0 = arith.constant 0 : i32
    return %arg0, %c0_i32 : i32, i32
  }
}

</mosaic_0001>

<llo_original>
// kernel: mlp_base_forward.1
$region0: #{mlp_base_forward.1}
  #allocation0 [shape = 'u32[]', space=smem, size = 0x4, offset = 0x4, fixed_abs, tag = 'smem constant byte address 0x4 - core index']
  #allocation1 [shape = 'u32[144,128]{1,0:T(1,128)}', space=vmem, size = 0x12000, scoped, tag = 'internal scratch']
  %s0 = inlined_call_operand.vmem [shape: f32[8,4], index: 0, kind: input, shape index: {}]
  %s1 = inlined_call_operand.vmem [shape: f32[4,20], index: 1, kind: input, shape index: {}]
  %s2 = inlined_call_operand.vmem [shape: f32[1,20], index: 2, kind: input, shape index: {}]
  %s3 = inlined_call_operand.hbm [shape: f32[8,20], index: 3, kind: output, shape index: {}]
  %s4 = sld [smem:[#allocation0]]
  $region22: #{mlp_base_forward.1} parent=0
    _
  %s6 = ssub.s32 1, %s4
  %s7 = scalar_select 0, %s6, %s4
  $region1: #{mlp_base_forward.1} parent=0
    #allocation2 [shape = 'u8[4096]{0}', space=vmem, size = 0x1000, scoped, tag = 'output window, operand 0, single buffered']
    #allocation3 [shape = 's32[1]{0}', space=sflag, size = 0x4, scoped, tag = 'scoped memory for mlp_base_forward.1']
    %8 = vsyncpa [#allocation3], 0
    // Predicated region
    $region2: #{mlp_base_forward.1} parent=1 // pred_check
      _
    $region3: #{mlp_base_forward.1} parent=1 // pred_check_branch
      %10 = sbr.rel (0) target = $region5
    $region4: #{mlp_base_forward.1} parent=1 // pred_region
      _
    $region5: #{mlp_base_forward.1} parent=1 // pred_fallthru
      _
    // Predicated region
    $region6: #{mlp_base_forward.1} parent=1 // pred_check
      _
    $region7: #{mlp_base_forward.1} parent=1 // pred_check_branch
      %12 = sbr.rel (0) target = $region9
    $region8: #{mlp_base_forward.1} parent=1 // pred_region
      _
    $region9: #{mlp_base_forward.1} parent=1 // pred_fallthru
      _
    // Predicated region
    $region10: #{mlp_base_forward.1} parent=1 // pred_check
      _
    $region11: #{mlp_base_forward.1} parent=1 // pred_check_branch
      %14 = sbr.rel (0) target = $region13
    $region12: #{mlp_base_forward.1} parent=1 // pred_region
      _
    $region13: #{mlp_base_forward.1} parent=1 // pred_fallthru
      _
    %v15 = vld [vmem:[%s0] sm:$0xff]
    %v16 = vld [vmem:[%s1] sm:$0xf]
    %v17 = vld [vmem:[%s2] sm:$0x1]
    %v19 = vlaneseq
    %v20 = vshrl.u32 %v19, 7
    %v21 = vsub.s32 0, %v20
    %v22 = vrot.slane %v17, %v21
    %vm24 = vcmask 31744
    %v26 = vsel %vm24, %v15, 0
    %vm28 = vcmask 1043456
    %v30 = vsel %vm28, %v16, 0
    %32 = vmatprep.subr.mxu0 0.0
    %33 = vmatpush1.msra.mxu0 0.0
    %34 = vmatprep.subr.mxu0 0.0
    %35 = vmatpush1.msra.mxu0 0.0
    %36 = vmatprep.subr.mxu0 0.0
    %37 = vmatpush1.msra.mxu0 0.0
    %38 = vmatprep.subr.mxu0 0.0
    %39 = vmatpush1.msra.mxu0 0.0
    %40 = vmatprep.subr.mxu0 0.0
    %41 = vmatpush1.msra.mxu0 0.0
    %42 = vmatprep.subr.mxu0 0.0
    %43 = vmatpush1.msra.mxu0 0.0
    %44 = vmatprep.subr.mxu0 0.0
    %45 = vmatpush1.msra.mxu0 0.0
    %46 = vmatprep.subr.mxu0 0.0
    %47 = vmatpush1.msra.mxu0 0.0
    %48 = vmatprep.subr.mxu0 0.0
    %49 = vmatpush1.msra.mxu0 0.0
    %50 = vmatprep.subr.mxu0 0.0
    %51 = vmatpush1.msra.mxu0 0.0
    %52 = vmatprep.subr.mxu0 0.0
    %53 = vmatpush1.msra.mxu0 0.0
    %54 = vmatprep.subr.mxu0 0.0
    %55 = vmatpush1.msra.mxu0 0.0
    %56 = vmatprep.subr.mxu0 0.0
    %57 = vmatpush1.msra.mxu0 0.0
    %58 = vmatprep.subr.mxu0 0.0
    %59 = vmatpush1.msra.mxu0 0.0
    %60 = vmatprep.subr.mxu0 0.0
    %61 = vmatpush1.msra.mxu0 0.0
    %62 = vmatprep.subr.mxu0 0.0
    %63 = vmatpush1.msra.mxu0 %v30
    %64 = vmatprep.subr.mxu0 0.0
    %65 = vmatpush2.msra.mxu0 0.0
    %66 = vmatprep.subr.mxu0 0.0
    %67 = vmatpush2.msra.mxu0 0.0
    %68 = vmatprep.subr.mxu0 0.0
    %69 = vmatpush2.msra.mxu0 0.0
    %70 = vmatprep.subr.mxu0 0.0
    %71 = vmatpush2.msra.mxu0 0.0
    %72 = vmatprep.subr.mxu0 0.0
    %73 = vmatpush2.msra.mxu0 0.0
    %74 = vmatprep.subr.mxu0 0.0
    %75 = vmatpush2.msra.mxu0 0.0
    %76 = vmatprep.subr.mxu0 0.0
    %77 = vmatpush2.msra.mxu0 0.0
    %78 = vmatprep.subr.mxu0 0.0
    %79 = vmatpush2.msra.mxu0 0.0
    %80 = vmatprep.subr.mxu0 0.0
    %81 = vmatpush2.msra.mxu0 0.0
    %82 = vmatprep.subr.mxu0 0.0
    %83 = vmatpush2.msra.mxu0 0.0
    %84 = vmatprep.subr.mxu0 0.0
    %85 = vmatpush2.msra.mxu0 0.0
    %86 = vmatprep.subr.mxu0 0.0
    %87 = vmatpush2.msra.mxu0 0.0
    %88 = vmatprep.subr.mxu0 0.0
    %89 = vmatpush2.msra.mxu0 0.0
    %90 = vmatprep.subr.mxu0 0.0
    %91 = vmatpush2.msra.mxu0 0.0
    %92 = vmatprep.subr.mxu0 0.0
    %93 = vmatpush2.msra.mxu0 0.0
    %94 = vmatprep.subr.mxu0 0.0
    %95 = vmatpush2.msra.mxu0 0.0
    %96 = vmatprep.mubr.f32.mxu0 0.0
    %97 = vmatmul.mubr.f32.gmra.mxu0 %v26
    %v98 = vpop.f32.mrf.mxu0
    %v99 = vadd.f32 %v22, %v98
    %v100 = vpop.f32.mrf.mxu0
    %101 = vdwg.mxu0
    %v102 = vmax.f32 %v99, 0.0
    %vm103 = vcmask 162816
    %104 = vst.msk [vmem:[#allocation2] sm:$0xff] %vm103, %v102
    // Predicated region
    $region14: #{mlp_base_forward.1} parent=1 // pred_check
      _
    $region15: #{mlp_base_forward.1} parent=1 // pred_check_branch
      %106 = sbr.rel (0) target = $region17
    $region16: #{mlp_base_forward.1} parent=1 // pred_region
      %s108 = ssub.s32 128, 128
      %109 = vsyncadd [#allocation3], %s108
      %s111 = sshll.u32 [#allocation2], 4
      %s112 = int_to_ptr.vmem [resolvable:$true] %s111
      %114 = dma.vmem_to_hbm [thread:$0]  %s112, 128, %s3, [#allocation3]
    $region17: #{mlp_base_forward.1} parent=1 // pred_fallthru
      _
    // Predicated region
    $region18: #{mlp_base_forward.1} parent=1 // pred_check
      _
    $region19: #{mlp_base_forward.1} parent=1 // pred_check_branch
      %116 = sbr.rel (0) target = $region21
    $region20: #{mlp_base_forward.1} parent=1 // pred_region
      %117 = dma.done [#allocation3], 128
    $region21: #{mlp_base_forward.1} parent=1 // pred_fallthru
      _
    %118 = vsyncpa [#allocation3], 1

</llo_original>
